<compile_context>
chip_gen: v5e
topology: v5e:2x2
jax: 0.10.0
libtpu: 0.0.40
codegen_flags: <defaults>
</compile_context>

<pallas_src>
import jax
import jax.numpy as jnp
from jax.experimental import pallas as pl
from jax.experimental.pallas import tpu as pltpu


def _round_up(x, m):
    return ((x + m - 1) // m) * m


# -----------------------------------------------------------------------------
# Kernel
# -----------------------------------------------------------------------------
def _make_mlp_kernel(num_layers, nerf):
    """Fused MLP kernel with batch on the lane axis.

    Ref order (nerf=True):   x, W0a, W0b, W0c, b0, W1, b1, ..., out
    Ref order (nerf=False):  x, W0,  b0,  W1,  b1, ...,          out
    Weights are torch-layout [out, in]; biases are [out, 1] columns.
    x is [in_dim, tile]; every hidden tensor is [hidden, tile]; output is [out, tile].
    """

    def kernel(*refs):
        x_ref = refs[0]
        o_ref = refs[-1]
        params = refs[1:-1]

        x = x_ref[...]  # [in_dim, tile] f32, batch on lanes

        if nerf:
            w0a, w0b, w0c, b0 = params[0], params[1], params[2], params[3]
            idx = 4
            # cat((x, sin x, cos x)) @ W0^T  ==  W0a@x + W0b@sin(x) + W0c@cos(x)
            h = (
                jnp.dot(w0a[...], x, preferred_element_type=jnp.float32)
                + jnp.dot(w0b[...], jnp.sin(x), preferred_element_type=jnp.float32)
                + jnp.dot(w0c[...], jnp.cos(x), preferred_element_type=jnp.float32)
                + b0[...]
            )
        else:
            w0, b0 = params[0], params[1]
            idx = 2
            h = jnp.dot(w0[...], x, preferred_element_type=jnp.float32) + b0[...]

        if num_layers > 1:
            h = jnp.maximum(h, 0.0)  # Dropout(eval) = identity, then ReLU

        for li in range(1, num_layers):
            w = params[idx]
            b = params[idx + 1]
            idx += 2
            h = jnp.dot(w[...], h, preferred_element_type=jnp.float32) + b[...]
            if li + 1 < num_layers:
                h = jnp.maximum(h, 0.0)

        o_ref[...] = h.astype(o_ref.dtype)

    return kernel


# -----------------------------------------------------------------------------
# Wrapper
# -----------------------------------------------------------------------------
def self_coll_net_forward(x_q, weights, biases, *, nerf=True):
    """Fused forward pass of SelfCollNet.

    Args:
      x_q:     [B, in_dim]  joint configuration (in_dim = 7 typically).
      weights: list of torch-layout [out_i, in_i] weight matrices.
      biases:  list of [out_i] bias vectors.
      nerf:    apply (x, sin x, cos x) encoding before the first layer.

    Returns:
      [B, out_dim] network output.
    """
    B, in_dim = x_q.shape
    num_layers = len(weights)
    out_dim = weights[-1].shape[0]

    # --- batch tiling: big lane tiles; single step for small batches ------------
    if B <= 1024:
        batch_tile = _round_up(B, 128)
        b_pad = batch_tile
    else:
        batch_tile = 512
        b_pad = _round_up(B, batch_tile)
    n_tiles = b_pad // batch_tile

    # Batch on the lane axis; zero-pad ragged tail (sliced off after the call).
    x_t = x_q.T  # [in_dim, B]
    if b_pad != B:
        x_t = jnp.pad(x_t, ((0, 0), (0, b_pad - B)))

    kernel = _make_mlp_kernel(num_layers, nerf)

    # --- specs -------------------------------------------------------------------
    in_specs = [pl.BlockSpec((in_dim, batch_tile), lambda i: (0, i))]
    flat_params = []

    def add_param(p):
        flat_params.append(p)
        # Full-array block, same block across the whole grid -> VMEM resident.
        in_specs.append(pl.BlockSpec(p.shape, lambda i: (0, 0)))

    if nerf:
        w0 = weights[0]  # [out0, 3*in_dim]
        assert w0.shape[1] == 3 * in_dim, "nerf=True expects first layer in = 3*in_dim"
        for s in range(3):
            add_param(w0[:, s * in_dim:(s + 1) * in_dim])  # [out0, in_dim]
    else:
        add_param(weights[0])
    add_param(biases[0].reshape(-1, 1))
    for li in range(1, num_layers):
        add_param(weights[li])
        add_param(biases[li].reshape(-1, 1))

    out_specs = pl.BlockSpec((out_dim, batch_tile), lambda i: (0, i))

    y_t = pl.pallas_call(
        kernel,
        out_shape=jax.ShapeDtypeStruct((out_dim, b_pad), x_q.dtype),
        grid=(n_tiles,),
        in_specs=in_specs,
        out_specs=out_specs,
        compiler_params=pltpu.CompilerParams(
            dimension_semantics=("parallel",),
        ),
    )(x_t, *flat_params)

    return y_t[:, :B].T  # [B, out_dim]


# -----------------------------------------------------------------------------
# Deterministic parameter init (xavier_normal_ on weights, zero biases)
# Weights kept in torch layout [out, in].
# -----------------------------------------------------------------------------
def init_params(key, fc_layer_sizes, nerf=True):
    weights, biases = [], []
    sizes = list(fc_layer_sizes)
    for i, (in_size, out_size) in enumerate(zip(sizes[:-1], sizes[1:])):
        if nerf and i == 0:
            in_size = in_size * 3
        key, kw = jax.random.split(key)
        std = (2.0 / (in_size + out_size)) ** 0.5  # xavier normal
        w = std * jax.random.normal(kw, (out_size, in_size), dtype=jnp.float32)
        b = jnp.zeros((out_size,), dtype=jnp.float32)
        weights.append(w)
        biases.append(b)
    return weights, biases


# -----------------------------------------------------------------------------
# Pure-JAX reference for validation
# -----------------------------------------------------------------------------
def reference_forward(x_q, weights, biases, nerf=True):
    x = x_q
    if nerf:
        x = jnp.concatenate([x, jnp.sin(x), jnp.cos(x)], axis=-1)
    h = x
    for li, (w, b) in enumerate(zip(weights, biases)):
        h = h @ w.T + b
        if li + 1 < len(weights):
            h = jnp.maximum(h, 0.0)  # Dropout(eval)=identity, ReLU
    return h


if __name__ == "__main__":
    # SelfCollNet(fc_layer_sizes=[7, 32, 32, 1], nerf=True)
    fc_layer_sizes = [7, 32, 32, 1]
    batch = 64  # small demo batch (ragged vs the 128-lane tile -> exercises padding)

    key = jax.random.PRNGKey(0)
    key, kx = jax.random.split(key)
    x_q = jax.random.uniform(kx, (batch, fc_layer_sizes[0]),
                             dtype=jnp.float32, minval=-3.14, maxval=3.14)

    weights, biases = init_params(key, fc_layer_sizes, nerf=True)

    y = self_coll_net_forward(x_q, weights, biases, nerf=True)
    y = jax.block_until_ready(y)

    y_ref = reference_forward(x_q, weights, biases, nerf=True)
    assert y.shape == (batch, fc_layer_sizes[-1]), y.shape
    assert jnp.allclose(y, y_ref, atol=1e-3, rtol=1e-3), "mismatch vs reference"

    print("KERNEL_OK")
</pallas_src>

<mosaic_0001>
module attributes {stable_mosaic.version = 11 : i64} {
  func.func @kernel(%arg0: i32, %arg1: memref<7x128xf32, #tpu.memory_space<vmem>>, %arg2: memref<32x7xf32, #tpu.memory_space<vmem>>, %arg3: memref<32x7xf32, #tpu.memory_space<vmem>>, %arg4: memref<32x7xf32, #tpu.memory_space<vmem>>, %arg5: memref<32x1xf32, #tpu.memory_space<vmem>>, %arg6: memref<32x32xf32, #tpu.memory_space<vmem>>, %arg7: memref<32x1xf32, #tpu.memory_space<vmem>>, %arg8: memref<1x32xf32, #tpu.memory_space<vmem>>, %arg9: memref<1x1xf32, #tpu.memory_space<vmem>>, %arg10: memref<1x128xf32, #tpu.memory_space<vmem>>) attributes {dimension_semantics = [#tpu.dimension_semantics<parallel>], iteration_bounds = array<i64: 1>, scalar_prefetch = 0 : i64, scratch_operands = 0 : i64, tpu.core_type = #tpu.core_type<tc>, window_params = [{transform_indices = @transform_0, window_bounds = array<i64: 7, 128>}, {pipeline_mode = #tpu.pipeline_mode<synchronous>, transform_indices = @transform_1, window_bounds = array<i64: 32, 7>}, {pipeline_mode = #tpu.pipeline_mode<synchronous>, transform_indices = @transform_2, window_bounds = array<i64: 32, 7>}, {pipeline_mode = #tpu.pipeline_mode<synchronous>, transform_indices = @transform_3, window_bounds = array<i64: 32, 7>}, {pipeline_mode = #tpu.pipeline_mode<synchronous>, transform_indices = @transform_4, window_bounds = array<i64: 32, 1>}, {pipeline_mode = #tpu.pipeline_mode<synchronous>, transform_indices = @transform_5, window_bounds = array<i64: 32, 32>}, {pipeline_mode = #tpu.pipeline_mode<synchronous>, transform_indices = @transform_6, window_bounds = array<i64: 32, 1>}, {pipeline_mode = #tpu.pipeline_mode<synchronous>, transform_indices = @transform_7, window_bounds = array<i64: 1, 32>}, {pipeline_mode = #tpu.pipeline_mode<synchronous>, transform_indices = @transform_8, window_bounds = array<i64: 1, 1>}, {transform_indices = @transform_9, window_bounds = array<i64: 1, 128>}]} {
    %c0 = arith.constant 0 : index
    %c0_0 = arith.constant 0 : index
    %0 = vector.load %arg1[%c0, %c0_0] : memref<7x128xf32, #tpu.memory_space<vmem>>, vector<7x128xf32>
    %c0_1 = arith.constant 0 : index
    %c0_2 = arith.constant 0 : index
    %1 = vector.load %arg2[%c0_1, %c0_2] : memref<32x7xf32, #tpu.memory_space<vmem>>, vector<32x7xf32>
    %cst = arith.constant dense<0.000000e+00> : vector<32x128xf32>
    %2 = tpu.matmul %1, %0, %cst {dimension_numbers = #tpu.dot_dimension_numbers<[1], [0], [0], [1], [0, 0, 1, 1], [], []>} : vector<32x7xf32>, vector<7x128xf32>, vector<32x128xf32> -> vector<32x128xf32>
    %c0_3 = arith.constant 0 : index
    %c0_4 = arith.constant 0 : index
    %3 = vector.load %arg3[%c0_3, %c0_4] : memref<32x7xf32, #tpu.memory_space<vmem>>, vector<32x7xf32>
    %4 = math.sin %0 : vector<7x128xf32>
    %cst_5 = arith.constant dense<0.000000e+00> : vector<32x128xf32>
    %5 = tpu.matmul %3, %4, %cst_5 {dimension_numbers = #tpu.dot_dimension_numbers<[1], [0], [0], [1], [0, 0, 1, 1], [], []>} : vector<32x7xf32>, vector<7x128xf32>, vector<32x128xf32> -> vector<32x128xf32>
    %6 = arith.addf %2, %5 : vector<32x128xf32>
    %c0_6 = arith.constant 0 : index
    %c0_7 = arith.constant 0 : index
    %7 = vector.load %arg4[%c0_6, %c0_7] : memref<32x7xf32, #tpu.memory_space<vmem>>, vector<32x7xf32>
    %8 = math.cos %0 : vector<7x128xf32>
    %cst_8 = arith.constant dense<0.000000e+00> : vector<32x128xf32>
    %9 = tpu.matmul %7, %8, %cst_8 {dimension_numbers = #tpu.dot_dimension_numbers<[1], [0], [0], [1], [0, 0, 1, 1], [], []>} : vector<32x7xf32>, vector<7x128xf32>, vector<32x128xf32> -> vector<32x128xf32>
    %10 = arith.addf %6, %9 : vector<32x128xf32>
    %c0_9 = arith.constant 0 : index
    %c0_10 = arith.constant 0 : index
    %11 = vector.load %arg5[%c0_9, %c0_10] : memref<32x1xf32, #tpu.memory_space<vmem>>, vector<32x1xf32>
    %12 = vector.broadcast %11 : vector<32x1xf32> to vector<32x128xf32>
    %13 = arith.addf %10, %12 : vector<32x128xf32>
    %cst_11 = arith.constant 0.000000e+00 : f32
    %14 = vector.broadcast %cst_11 : f32 to vector<32x128xf32>
    %15 = arith.maximumf %13, %14 : vector<32x128xf32>
    %c0_12 = arith.constant 0 : index
    %c0_13 = arith.constant 0 : index
    %16 = vector.load %arg6[%c0_12, %c0_13] : memref<32x32xf32, #tpu.memory_space<vmem>>, vector<32x32xf32>
    %cst_14 = arith.constant dense<0.000000e+00> : vector<32x128xf32>
    %17 = tpu.matmul %16, %15, %cst_14 {dimension_numbers = #tpu.dot_dimension_numbers<[1], [0], [0], [1], [0, 0, 1, 1], [], []>} : vector<32x32xf32>, vector<32x128xf32>, vector<32x128xf32> -> vector<32x128xf32>
    %c0_15 = arith.constant 0 : index
    %c0_16 = arith.constant 0 : index
    %18 = vector.load %arg7[%c0_15, %c0_16] : memref<32x1xf32, #tpu.memory_space<vmem>>, vector<32x1xf32>
    %19 = vector.broadcast %18 : vector<32x1xf32> to vector<32x128xf32>
    %20 = arith.addf %17, %19 : vector<32x128xf32>
    %cst_17 = arith.constant 0.000000e+00 : f32
    %21 = vector.broadcast %cst_17 : f32 to vector<32x128xf32>
    %22 = arith.maximumf %20, %21 : vector<32x128xf32>
    %c0_18 = arith.constant 0 : index
    %c0_19 = arith.constant 0 : index
    %23 = vector.load %arg8[%c0_18, %c0_19] : memref<1x32xf32, #tpu.memory_space<vmem>>, vector<1x32xf32>
    %cst_20 = arith.constant dense<0.000000e+00> : vector<1x128xf32>
    %24 = tpu.matmul %23, %22, %cst_20 {dimension_numbers = #tpu.dot_dimension_numbers<[1], [0], [0], [1], [0, 0, 1, 1], [], []>} : vector<1x32xf32>, vector<32x128xf32>, vector<1x128xf32> -> vector<1x128xf32>
    %c0_21 = arith.constant 0 : index
    %c0_22 = arith.constant 0 : index
    %25 = vector.load %arg9[%c0_21, %c0_22] : memref<1x1xf32, #tpu.memory_space<vmem>>, vector<1x1xf32>
    %26 = vector.broadcast %25 : vector<1x1xf32> to vector<1x128xf32>
    %27 = arith.addf %24, %26 : vector<1x128xf32>
    %c0_23 = arith.constant 0 : index
    %c0_24 = arith.constant 0 : index
    %28 = vector.load %arg10[%c0_23, %c0_24] : memref<1x128xf32, #tpu.memory_space<vmem>>, vector<1x128xf32>
    tpu.vector_store %arg10[%c0_23, %c0_24], %27 {strides = array<i32>} : memref<1x128xf32, #tpu.memory_space<vmem>>, vector<1x128xf32>,
    return
  }
  func.func @transform_0(%arg0: i32) -> (i32, i32) {
    %c0_i32 = arith.constant 0 : i32
    %c0_i32_0 = arith.constant 0 : i32
    return %c0_i32, %arg0 : i32, i32
  }
  func.func @transform_1(%arg0: i32) -> (i32, i32) {
    %c0_i32 = arith.constant 0 : i32
    %c0_i32_0 = arith.constant 0 : i32
    %c0_i32_1 = arith.constant 0 : i32
    return %c0_i32, %c0_i32_0 : i32, i32
  }
  func.func @transform_2(%arg0: i32) -> (i32, i32) {
    %c0_i32 = arith.constant 0 : i32
    %c0_i32_0 = arith.constant 0 : i32
    %c0_i32_1 = arith.constant 0 : i32
    return %c0_i32, %c0_i32_0 : i32, i32
  }
  func.func @transform_3(%arg0: i32) -> (i32, i32) {
    %c0_i32 = arith.constant 0 : i32
    %c0_i32_0 = arith.constant 0 : i32
    %c0_i32_1 = arith.constant 0 : i32
    return %c0_i32, %c0_i32_0 : i32, i32
  }
  func.func @transform_4(%arg0: i32) -> (i32, i32) {
    %c0_i32 = arith.constant 0 : i32
    %c0_i32_0 = arith.constant 0 : i32
    %c0_i32_1 = arith.constant 0 : i32
    return %c0_i32, %c0_i32_0 : i32, i32
  }
  func.func @transform_5(%arg0: i32) -> (i32, i32) {
    %c0_i32 = arith.constant 0 : i32
    %c0_i32_0 = arith.constant 0 : i32
    %c0_i32_1 = arith.constant 0 : i32
    return %c0_i32, %c0_i32_0 : i32, i32
  }
  func.func @transform_6(%arg0: i32) -> (i32, i32) {
    %c0_i32 = arith.constant 0 : i32
    %c0_i32_0 = arith.constant 0 : i32
    %c0_i32_1 = arith.constant 0 : i32
    return %c0_i32, %c0_i32_0 : i32, i32
  }
  func.func @transform_7(%arg0: i32) -> (i32, i32) {
    %c0_i32 = arith.constant 0 : i32
    %c0_i32_0 = arith.constant 0 : i32
    %c0_i32_1 = arith.constant 0 : i32
    return %c0_i32, %c0_i32_0 : i32, i32
  }
  func.func @transform_8(%arg0: i32) -> (i32, i32) {
    %c0_i32 = arith.constant 0 : i32
    %c0_i32_0 = arith.constant 0 : i32
    %c0_i32_1 = arith.constant 0 : i32
    return %c0_i32, %c0_i32_0 : i32, i32
  }
  func.func @transform_9(%arg0: i32) -> (i32, i32) {
    %c0_i32 = arith.constant 0 : i32
    %c0_i32_0 = arith.constant 0 : i32
    return %c0_i32, %arg0 : i32, i32
  }
}

</mosaic_0001>

<llo_original>
// kernel: tpu_custom_call.1
$region0: #{tpu_custom_call.1}
  #allocation0 [shape = 'u32[]', space=smem, size = 0x4, offset = 0x4, fixed_abs, tag = 'smem constant byte address 0x4 - core index']
  #allocation1 [shape = 'u32[72,128]{1,0:T(1,128)}', space=vmem, size = 0x9000, scoped, tag = 'internal scratch']
  #allocation2 [shape = 'f32[1,1]{1,0:T(1,128)S(1)}', space=vmem, size = 0x200, scoped, tag = 'scoped memory for tpu_custom_call.1']
  %s0 = inlined_call_operand.vmem [shape: f32[7,128], index: 0, kind: input, shape index: {}]
  %s1 = inlined_call_operand.vmem [shape: f32[32,7], index: 1, kind: input, shape index: {}]
  %s2 = inlined_call_operand.vmem [shape: f32[32,7], index: 2, kind: input, shape index: {}]
  %s3 = inlined_call_operand.vmem [shape: f32[32,7], index: 3, kind: input, shape index: {}]
  %s4 = inlined_call_operand.vmem [shape: f32[32,1], index: 4, kind: input, shape index: {}]
  %s5 = inlined_call_operand.vmem [shape: f32[32,32], index: 5, kind: input, shape index: {}]
  %s6 = inlined_call_operand.vmem [shape: f32[32,1], index: 6, kind: input, shape index: {}]
  %s7 = inlined_call_operand.vmem [shape: f32[1,32], index: 7, kind: input, shape index: {}]
  %s8 = inlined_call_operand.<no memory space> [shape: f32[1,1], index: 8, kind: input, shape index: {}]
  %s9 = inlined_call_operand.hbm [shape: f32[1,128], index: 9, kind: output, shape index: {}]
  %s10 = sld [smem:[#allocation0]]
  $region46: #{tpu_custom_call.1} parent=0
    _
  %s12 = ssub.s32 1, %s10
  %s13 = scalar_select 0, %s12, %s10
  %v14 = vstv %s8
  %15 = vst [vmem:[#allocation2] sm:$0x1] %v14
  $region1: #{tpu_custom_call.1} parent=0
    #allocation3 [shape = 'u8[512]{0}', space=vmem, size = 0x400, scoped, tag = 'output window, operand 0, single buffered']
    #allocation4 [shape = 's32[1]{0}', space=sflag, size = 0x4, scoped, tag = 'scoped memory for tpu_custom_call.1']
    %16 = vsyncpa [#allocation4], 0
    // Predicated region
    $region2: #{tpu_custom_call.1} parent=1 // pred_check
      _
    $region3: #{tpu_custom_call.1} parent=1 // pred_check_branch
      %18 = sbr.rel (0) target = $region5
    $region4: #{tpu_custom_call.1} parent=1 // pred_region
      _
    $region5: #{tpu_custom_call.1} parent=1 // pred_fallthru
      _
    // Predicated region
    $region6: #{tpu_custom_call.1} parent=1 // pred_check
      _
    $region7: #{tpu_custom_call.1} parent=1 // pred_check_branch
      %20 = sbr.rel (0) target = $region9
    $region8: #{tpu_custom_call.1} parent=1 // pred_region
      _
    $region9: #{tpu_custom_call.1} parent=1 // pred_fallthru
      _
    // Predicated region
    $region10: #{tpu_custom_call.1} parent=1 // pred_check
      _
    $region11: #{tpu_custom_call.1} parent=1 // pred_check_branch
      %22 = sbr.rel (0) target = $region13
    $region12: #{tpu_custom_call.1} parent=1 // pred_region
      _
    $region13: #{tpu_custom_call.1} parent=1 // pred_fallthru
      _
    // Predicated region
    $region14: #{tpu_custom_call.1} parent=1 // pred_check
      _
    $region15: #{tpu_custom_call.1} parent=1 // pred_check_branch
      %24 = sbr.rel (0) target = $region17
    $region16: #{tpu_custom_call.1} parent=1 // pred_region
      _
    $region17: #{tpu_custom_call.1} parent=1 // pred_fallthru
      _
    // Predicated region
    $region18: #{tpu_custom_call.1} parent=1 // pred_check
      _
    $region19: #{tpu_custom_call.1} parent=1 // pred_check_branch
      %26 = sbr.rel (0) target = $region21
    $region20: #{tpu_custom_call.1} parent=1 // pred_region
      _
    $region21: #{tpu_custom_call.1} parent=1 // pred_fallthru
      _
    // Predicated region
    $region22: #{tpu_custom_call.1} parent=1 // pred_check
      _
    $region23: #{tpu_custom_call.1} parent=1 // pred_check_branch
      %28 = sbr.rel (0) target = $region25
    $region24: #{tpu_custom_call.1} parent=1 // pred_region
      _
    $region25: #{tpu_custom_call.1} parent=1 // pred_fallthru
      _
    // Predicated region
    $region26: #{tpu_custom_call.1} parent=1 // pred_check
      _
    $region27: #{tpu_custom_call.1} parent=1 // pred_check_branch
      %30 = sbr.rel (0) target = $region29
    $region28: #{tpu_custom_call.1} parent=1 // pred_region
      _
    $region29: #{tpu_custom_call.1} parent=1 // pred_fallthru
      _
    // Predicated region
    $region30: #{tpu_custom_call.1} parent=1 // pred_check
      _
    $region31: #{tpu_custom_call.1} parent=1 // pred_check_branch
      %32 = sbr.rel (0) target = $region33
    $region32: #{tpu_custom_call.1} parent=1 // pred_region
      _
    $region33: #{tpu_custom_call.1} parent=1 // pred_fallthru
      _
    // Predicated region
    $region34: #{tpu_custom_call.1} parent=1 // pred_check
      _
    $region35: #{tpu_custom_call.1} parent=1 // pred_check_branch
      %34 = sbr.rel (0) target = $region37
    $region36: #{tpu_custom_call.1} parent=1 // pred_region
      _
    $region37: #{tpu_custom_call.1} parent=1 // pred_fallthru
      _
    %v35 = vld [vmem:[%s0] sm:$0x7f]
    %v36 = vld [vmem:[%s1] sm:$0xff]
    %v37 = vld [vmem:[%s1 + $0x8] sm:$0xff]
    %v38 = vld [vmem:[%s1 + $0x10] sm:$0xff]
    %v39 = vld [vmem:[%s1 + $0x18] sm:$0xff]
    %v40 = vld [vmem:[%s2] sm:$0xff]
    %v41 = vld [vmem:[%s2 + $0x8] sm:$0xff]
    %v42 = vld [vmem:[%s2 + $0x10] sm:$0xff]
    %v43 = vld [vmem:[%s2 + $0x18] sm:$0xff]
    %v44 = vand.u32 2147483647, %v35
    %vm45 = vcmp.le.f32.partialorder %v44, 0.7853982
    %vm46 = vcmp.lt.s32.totalorder %v35, 0
    %v47 = vand.u32 %v35, 2139095040
    %v48 = vshrl.u32 %v47, 23
    %v49 = vsub.s32 %v48, 127
    %v50 = vand.u32 2147483647, %v35
    %v51 = vand.u32 %v50, 8388607
    %v52 = vor.u32 %v51, 8388608
    %v53 = vsub.s32 0, %v52
    %v54 = vadd.s32 %v49, 1
    %vm55 = vcmp.gt.s32.totalorder %v54, 0
    %v56 = vsel %vm55, %v54, 0
    %v57 = vshrl.u32 %v56, 5
    %v58 = vand.u32 %v56, 31
    %v59 = vsub.s32 32, %v58
    %v60 = vshrl.u32 683565275, %v59
    %v61 = vshll.u32 683565275, %v58
    %v62 = vshrl.u32 2475754826, %v59
    %v63 = vor.u32 %v61, %v62
    %v64 = vshll.u32 2475754826, %v58
    %v65 = vshrl.u32 2131351028, %v59
    %v66 = vor.u32 %v64, %v65
    %v67 = vshll.u32 2131351028, %v58
    %v68 = vshrl.u32 2102212464, %v59
    %v69 = vor.u32 %v67, %v68
    %v70 = vshll.u32 2102212464, %v58
    %v71 = vshrl.u32 920167782, %v59
    %v72 = vor.u32 %v70, %v71
    %v73 = vshll.u32 920167782, %v58
    %v74 = vshrl.u32 1326507024, %v59
    %v75 = vor.u32 %v73, %v74
    %vm76 = vcmp.lt.s32.totalorder %v57, 1
    %vm77 = vcmp.lt.s32.totalorder %v57, 2
    %vm78 = vcmp.lt.s32.totalorder %v57, 3
    %vm79 = vcmp.lt.s32.totalorder %v57, 4
    %v80 = vsel %vm76, %v60, %v63
    %v81 = vsel %vm79, %v69, 2102212464
    %v82 = vsel %vm78, %v66, %v81
    %v83 = vsel %vm77, %v80, %v82
    %v84 = vsel %vm76, %v63, %v66
    %v85 = vsel %vm79, %v72, 920167782
    %v86 = vsel %vm78, %v69, %v85
    %v87 = vsel %vm77, %v84, %v86
    %v88 = vsel %vm76, %v66, %v69
    %v89 = vsel %vm79, %v75, 1326507024
    %v90 = vsel %vm78, %v72, %v89
    %v91 = vsel %vm77, %v88, %v90
    %v92 = vshll.u32 %v52, 8
    %v93 = vand.u32 %v92, 65535
    %v94 = vshrl.u32 %v92, 16
    %v95 = vand.u32 %v91, 65535
    %v96 = vshrl.u32 %v91, 16
    %v97 = vmul.u32 %v93, %v95
    %v98 = vmul.u32 %v93, %v96
    %v99 = vmul.u32 %v94, %v95
    %v100 = vmul.u32 %v94, %v96
    %v101 = vshll.u32 %v98, 16
    %v102 = vshrl.u32 %v98, 16
    %v103 = vshll.u32 %v99, 16
    %v104 = vshrl.u32 %v99, 16
    %vm105 = vc.u32 %v97, %v101
    %v106 = vsel %vm105, 1, 0
    %v107 = vadd.s32 %v97, %v101
    %v108 = vadd.s32 %v100, %v106
    %vm109 = vc.u32 %v107, %v103
    %v110 = vsel %vm109, 1, 0
    %v111 = vadd.s32 %v107, %v103
    %v112 = vadd.s32 %v108, %v110
    %v113 = vadd.s32 %v112, %v102
    %v114 = vadd.s32 %v113, %v104
    %v115 = vand.u32 %v92, 65535
    %v116 = vshrl.u32 %v92, 16
    %v117 = vand.u32 %v87, 65535
    %v118 = vshrl.u32 %v87, 16
    %v119 = vmul.u32 %v115, %v117
    %v120 = vmul.u32 %v115, %v118
    %v121 = vmul.u32 %v116, %v117
    %v122 = vmul.u32 %v116, %v118
    %v123 = vshll.u32 %v120, 16
    %v124 = vshrl.u32 %v120, 16
    %v125 = vshll.u32 %v121, 16
    %v126 = vshrl.u32 %v121, 16
    %vm127 = vc.u32 %v119, %v123
    %v128 = vsel %vm127, 1, 0
    %v129 = vadd.s32 %v119, %v123
    %v130 = vadd.s32 %v122, %v128
    %vm131 = vc.u32 %v129, %v125
    %v132 = vsel %vm131, 1, 0
    %v133 = vadd.s32 %v129, %v125
    %v134 = vadd.s32 %v130, %v132
    %v135 = vadd.s32 %v134, %v124
    %v136 = vadd.s32 %v135, %v126
    %v137 = vmul.u32 %v92, %v83
    %v138 = vadd.s32 %v114, %v133
    %vm139 = vc.u32 %v114, %v133
    %v140 = vadd.s32 %v136, 1
    %v141 = vsel %vm139, %v140, %v136
    %v142 = vadd.s32 %v137, %v141
    %v143 = vadd.s32 %v142, 536870912
    %v144 = vshrl.u32 %v143, 30
    %v145 = vshll.u32 %v144, 30
    %v146 = vsub.s32 %v142, %v145
    %vm147 = vcmp.lt.s32.totalorder %v146, 0
    %v148 = vsub.s32 0, %v146
    %v149 = vsel %vm147, %v148, %v146
    %v150 = vclz %v149
    %v151 = vsub.s32 %v150, 2
    %vm152 = vcmp.gt.s32.totalorder 0, %v151
    %v153 = vsel %vm152, 0, %v151
    %v154 = vsub.s32 32, %v153
    %v155 = vshll.u32 %v146, %v153
    %v156 = vshrl.u32 %v138, %v154
    %v157 = vor.u32 %v155, %v156
    %v158 = vsub.s32 4294967266, %v153
    %v159 = vadd.s32 %v158, 127
    %v160 = vshll.u32 %v159, 23
    %v161 = vor.u32 4788187, %v160
    %v162 = vand.u32 2147483647, %v161
    %v164 = vcvt.s32.f32 %v157
    %v165 = vmul.f32 %v164, %v162
    %v166 = vxor.u32 %v165, 2147483648
    %v167 = vsel %vm46, %v166, %v165
    %v168 = vsub.s32 4, %v144
    %v169 = vsel %vm46, %v168, %v144
    %v170 = vsel %vm45, %v35, %v167
    %v171 = vsel %vm45, 0, %v169
    %v172 = vmul.f32 %v170, %v170
    %v173 = vmul.f32 %v172, -0.001358992
    %v174 = vadd.f32 %v173, 0.041655596
    %v175 = vmul.f32 %v172, %v174
    %v176 = vadd.f32 %v175, -0.4999988
    %v177 = vmul.f32 %v172, %v176
    %v178 = vadd.f32 1.0, %v177
    %v179 = vmul.f32 %v170, %v170
    %v180 = vmul.f32 %v179, -0.00019511016
    %v181 = vadd.f32 %v180, 0.008332121
    %v182 = vmul.f32 %v179, %v181
    %v183 = vadd.f32 %v182, -0.16666654
    %v184 = vmul.f32 %v179, %v183
    %v185 = vadd.f32 %v184, 1.0
    %v186 = vmul.f32 %v185, %v170
    %vm187 = vweird.f32 %v35
    %v188 = vadd.s32 %v171, 3
    %v189 = vand.u32 %v188, 3
    %vm190 = vcmp.lt.s32.totalorder %v189, 2
    %vm191 = vcmp.eq.s32.totalorder %v189, 0
    %v192 = vxor.u32 %v186, 2147483648
    %v193 = vsel %vm191, %v178, %v192
    %vm194 = vcmp.eq.s32.totalorder %v189, 2
    %v195 = vxor.u32 %v178, 2147483648
    %v196 = vsel %vm194, %v195, %v186
    %v197 = vsel %vm190, %v193, %v196
    %v198 = vsel %vm187, nan, %v197
    %vm199 = vcmask 56320
    %v201 = vsel %vm199, %v40, 0
    %v204 = vsel %vm199, %v41, 0
    %v207 = vsel %vm199, %v42, 0
    %v210 = vsel %vm199, %v43, 0
    %vm212 = vcmask 1046528
    %v214 = vsel %vm212, %v198, 0
    %216 = vmatpush.msra.mxu0 0.0
    %217 = vmatpush.msra.mxu0 0.0
    %218 = vmatpush.msra.mxu0 0.0
    %219 = vmatpush.msra.mxu0 0.0
    %220 = vmatpush.msra.mxu0 0.0
    %221 = vmatpush.msra.mxu0 0.0
    %222 = vmatpush.msra.mxu0 0.0
    %223 = vmatpush.msra.mxu0 0.0
    %224 = vmatpush.msra.mxu0 0.0
    %225 = vmatpush.msra.mxu0 0.0
    %226 = vmatpush.msra.mxu0 0.0
    %227 = vmatpush.msra.mxu0 0.0
    %228 = vmatpush.msra.mxu0 0.0
    %229 = vmatpush.msra.mxu0 0.0
    %230 = vmatpush.msra.mxu0 0.0
    %231 = vmatpush.msra.mxu0 %v214
    %232 = vmatmul.f32.gmra.mxu0 %v201
    %v233 = vpop.f32.mrf.mxu0
    %v234 = vadd.f32 0.0, %v233
    %235 = vmatmul.f32.gmra.mxu0 %v204
    %v236 = vpop.f32.mrf.mxu0
    %v237 = vadd.f32 0.0, %v236
    %238 = vmatmul.f32.gmra.mxu0 %v207
    %v239 = vpop.f32.mrf.mxu0
    %v240 = vadd.f32 0.0, %v239
    %241 = vmatmul.f32.gmra.mxu0 %v210
    %v242 = vpop.f32.mrf.mxu0
    %v243 = vadd.f32 0.0, %v242
    %244 = vdwg.mxu0
    %v246 = vsel %vm199, %v36, 0
    %v249 = vsel %vm199, %v37, 0
    %v252 = vsel %vm199, %v38, 0
    %v255 = vsel %vm199, %v39, 0
    %v258 = vsel %vm212, %v35, 0
    %260 = vmatpush.msra.mxu0 0.0
    %261 = vmatpush.msra.mxu0 0.0
    %262 = vmatpush.msra.mxu0 0.0
    %263 = vmatpush.msra.mxu0 0.0
    %264 = vmatpush.msra.mxu0 0.0
    %265 = vmatpush.msra.mxu0 0.0
    %266 = vmatpush.msra.mxu0 0.0
    %267 = vmatpush.msra.mxu0 0.0
    %268 = vmatpush.msra.mxu0 0.0
    %269 = vmatpush.msra.mxu0 0.0
    %270 = vmatpush.msra.mxu0 0.0
    %271 = vmatpush.msra.mxu0 0.0
    %272 = vmatpush.msra.mxu0 0.0
    %273 = vmatpush.msra.mxu0 0.0
    %274 = vmatpush.msra.mxu0 0.0
    %275 = vmatpush.msra.mxu0 %v258
    %276 = vmatmul.f32.gmra.mxu0 %v246
    %v277 = vpop.f32.mrf.mxu0
    %v278 = vadd.f32 %v234, %v277
    %279 = vmatmul.f32.gmra.mxu0 %v249
    %v280 = vpop.f32.mrf.mxu0
    %v281 = vadd.f32 %v237, %v280
    %282 = vmatmul.f32.gmra.mxu0 %v252
    %v283 = vpop.f32.mrf.mxu0
    %v284 = vadd.f32 %v240, %v283
    %285 = vmatmul.f32.gmra.mxu0 %v255
    %v286 = vpop.f32.mrf.mxu0
    %v287 = vadd.f32 %v243, %v286
    %288 = vdwg.mxu0
    %v289 = vld [vmem:[%s3] sm:$0xff]
    %v290 = vld [vmem:[%s3 + $0x8] sm:$0xff]
    %v291 = vld [vmem:[%s3 + $0x10] sm:$0xff]
    %v292 = vld [vmem:[%s3 + $0x18] sm:$0xff]
    %v293 = vand.u32 2147483647, %v35
    %vm294 = vcmp.le.f32.partialorder %v293, 0.7853982
    %vm295 = vcmp.lt.s32.totalorder %v35, 0
    %v296 = vand.u32 %v35, 2139095040
    %v297 = vshrl.u32 %v296, 23
    %v298 = vsub.s32 %v297, 127
    %v299 = vand.u32 2147483647, %v35
    %v300 = vand.u32 %v299, 8388607
    %v301 = vor.u32 %v300, 8388608
    %v302 = vsub.s32 0, %v301
    %v303 = vadd.s32 %v298, 1
    %vm304 = vcmp.gt.s32.totalorder %v303, 0
    %v305 = vsel %vm304, %v303, 0
    %v306 = vshrl.u32 %v305, 5
    %v307 = vand.u32 %v305, 31
    %v308 = vsub.s32 32, %v307
    %v309 = vshrl.u32 683565275, %v308
    %v310 = vshll.u32 683565275, %v307
    %v311 = vshrl.u32 2475754826, %v308
    %v312 = vor.u32 %v310, %v311
    %v313 = vshll.u32 2475754826, %v307
    %v314 = vshrl.u32 2131351028, %v308
    %v315 = vor.u32 %v313, %v314
    %v316 = vshll.u32 2131351028, %v307
    %v317 = vshrl.u32 2102212464, %v308
    %v318 = vor.u32 %v316, %v317
    %v319 = vshll.u32 2102212464, %v307
    %v320 = vshrl.u32 920167782, %v308
    %v321 = vor.u32 %v319, %v320
    %v322 = vshll.u32 920167782, %v307
    %v323 = vshrl.u32 1326507024, %v308
    %v324 = vor.u32 %v322, %v323
    %vm325 = vcmp.lt.s32.totalorder %v306, 1
    %vm326 = vcmp.lt.s32.totalorder %v306, 2
    %vm327 = vcmp.lt.s32.totalorder %v306, 3
    %vm328 = vcmp.lt.s32.totalorder %v306, 4
    %v329 = vsel %vm325, %v309, %v312
    %v330 = vsel %vm328, %v318, 2102212464
    %v331 = vsel %vm327, %v315, %v330
    %v332 = vsel %vm326, %v329, %v331
    %v333 = vsel %vm325, %v312, %v315
    %v334 = vsel %vm328, %v321, 920167782
    %v335 = vsel %vm327, %v318, %v334
    %v336 = vsel %vm326, %v333, %v335
    %v337 = vsel %vm325, %v315, %v318
    %v338 = vsel %vm328, %v324, 1326507024
    %v339 = vsel %vm327, %v321, %v338
    %v340 = vsel %vm326, %v337, %v339
    %v341 = vshll.u32 %v301, 8
    %v342 = vand.u32 %v341, 65535
    %v343 = vshrl.u32 %v341, 16
    %v344 = vand.u32 %v340, 65535
    %v345 = vshrl.u32 %v340, 16
    %v346 = vmul.u32 %v342, %v344
    %v347 = vmul.u32 %v342, %v345
    %v348 = vmul.u32 %v343, %v344
    %v349 = vmul.u32 %v343, %v345
    %v350 = vshll.u32 %v347, 16
    %v351 = vshrl.u32 %v347, 16
    %v352 = vshll.u32 %v348, 16
    %v353 = vshrl.u32 %v348, 16
    %vm354 = vc.u32 %v346, %v350
    %v355 = vsel %vm354, 1, 0
    %v356 = vadd.s32 %v346, %v350
    %v357 = vadd.s32 %v349, %v355
    %vm358 = vc.u32 %v356, %v352
    %v359 = vsel %vm358, 1, 0
    %v360 = vadd.s32 %v356, %v352
    %v361 = vadd.s32 %v357, %v359
    %v362 = vadd.s32 %v361, %v351
    %v363 = vadd.s32 %v362, %v353
    %v364 = vand.u32 %v341, 65535
    %v365 = vshrl.u32 %v341, 16
    %v366 = vand.u32 %v336, 65535
    %v367 = vshrl.u32 %v336, 16
    %v368 = vmul.u32 %v364, %v366
    %v369 = vmul.u32 %v364, %v367
    %v370 = vmul.u32 %v365, %v366
    %v371 = vmul.u32 %v365, %v367
    %v372 = vshll.u32 %v369, 16
    %v373 = vshrl.u32 %v369, 16
    %v374 = vshll.u32 %v370, 16
    %v375 = vshrl.u32 %v370, 16
    %vm376 = vc.u32 %v368, %v372
    %v377 = vsel %vm376, 1, 0
    %v378 = vadd.s32 %v368, %v372
    %v379 = vadd.s32 %v371, %v377
    %vm380 = vc.u32 %v378, %v374
    %v381 = vsel %vm380, 1, 0
    %v382 = vadd.s32 %v378, %v374
    %v383 = vadd.s32 %v379, %v381
    %v384 = vadd.s32 %v383, %v373
    %v385 = vadd.s32 %v384, %v375
    %v386 = vmul.u32 %v341, %v332
    %v387 = vadd.s32 %v363, %v382
    %vm388 = vc.u32 %v363, %v382
    %v389 = vadd.s32 %v385, 1
    %v390 = vsel %vm388, %v389, %v385
    %v391 = vadd.s32 %v386, %v390
    %v392 = vadd.s32 %v391, 536870912
    %v393 = vshrl.u32 %v392, 30
    %v394 = vshll.u32 %v393, 30
    %v395 = vsub.s32 %v391, %v394
    %vm396 = vcmp.lt.s32.totalorder %v395, 0
    %v397 = vsub.s32 0, %v395
    %v398 = vsel %vm396, %v397, %v395
    %v399 = vclz %v398
    %v400 = vsub.s32 %v399, 2
    %vm401 = vcmp.gt.s32.totalorder 0, %v400
    %v402 = vsel %vm401, 0, %v400
    %v403 = vsub.s32 32, %v402
    %v404 = vshll.u32 %v395, %v402
    %v405 = vshrl.u32 %v387, %v403
    %v406 = vor.u32 %v404, %v405
    %v407 = vsub.s32 4294967266, %v402
    %v408 = vadd.s32 %v407, 127
    %v409 = vshll.u32 %v408, 23
    %v410 = vor.u32 4788187, %v409
    %v411 = vand.u32 2147483647, %v410
    %v413 = vcvt.s32.f32 %v406
    %v414 = vmul.f32 %v413, %v411
    %v415 = vxor.u32 %v414, 2147483648
    %v416 = vsel %vm295, %v415, %v414
    %v417 = vsub.s32 4, %v393
    %v418 = vsel %vm295, %v417, %v393
    %v419 = vsel %vm294, %v35, %v416
    %v420 = vsel %vm294, 0, %v418
    %v421 = vmul.f32 %v419, %v419
    %v422 = vmul.f32 %v421, -0.001358992
    %v423 = vadd.f32 %v422, 0.041655596
    %v424 = vmul.f32 %v421, %v423
    %v425 = vadd.f32 %v424, -0.4999988
    %v426 = vmul.f32 %v421, %v425
    %v427 = vadd.f32 1.0, %v426
    %v428 = vmul.f32 %v419, %v419
    %v429 = vmul.f32 %v428, -0.00019511016
    %v430 = vadd.f32 %v429, 0.008332121
    %v431 = vmul.f32 %v428, %v430
    %v432 = vadd.f32 %v431, -0.16666654
    %v433 = vmul.f32 %v428, %v432
    %v434 = vadd.f32 %v433, 1.0
    %v435 = vmul.f32 %v434, %v419
    %vm436 = vweird.f32 %v35
    %v437 = vand.u32 %v420, 3
    %vm438 = vcmp.lt.s32.totalorder %v437, 2
    %vm439 = vcmp.eq.s32.totalorder %v437, 0
    %v440 = vxor.u32 %v435, 2147483648
    %v441 = vsel %vm439, %v427, %v440
    %vm442 = vcmp.eq.s32.totalorder %v437, 2
    %v443 = vxor.u32 %v427, 2147483648
    %v444 = vsel %vm442, %v443, %v435
    %v445 = vsel %vm438, %v441, %v444
    %v446 = vsel %vm436, nan, %v445
    %v448 = vsel %vm199, %v289, 0
    %v451 = vsel %vm199, %v290, 0
    %v454 = vsel %vm199, %v291, 0
    %v457 = vsel %vm199, %v292, 0
    %v460 = vsel %vm212, %v446, 0
    %462 = vmatpush.msra.mxu0 0.0
    %463 = vmatpush.msra.mxu0 0.0
    %464 = vmatpush.msra.mxu0 0.0
    %465 = vmatpush.msra.mxu0 0.0
    %466 = vmatpush.msra.mxu0 0.0
    %467 = vmatpush.msra.mxu0 0.0
    %468 = vmatpush.msra.mxu0 0.0
    %469 = vmatpush.msra.mxu0 0.0
    %470 = vmatpush.msra.mxu0 0.0
    %471 = vmatpush.msra.mxu0 0.0
    %472 = vmatpush.msra.mxu0 0.0
    %473 = vmatpush.msra.mxu0 0.0
    %474 = vmatpush.msra.mxu0 0.0
    %475 = vmatpush.msra.mxu0 0.0
    %476 = vmatpush.msra.mxu0 0.0
    %477 = vmatpush.msra.mxu0 %v460
    %478 = vmatmul.f32.gmra.mxu0 %v448
    %v479 = vpop.f32.mrf.mxu0
    %v480 = vadd.f32 0.0, %v479
    %481 = vmatmul.f32.gmra.mxu0 %v451
    %v482 = vpop.f32.mrf.mxu0
    %v483 = vadd.f32 0.0, %v482
    %484 = vmatmul.f32.gmra.mxu0 %v454
    %v485 = vpop.f32.mrf.mxu0
    %v486 = vadd.f32 0.0, %v485
    %487 = vmatmul.f32.gmra.mxu0 %v457
    %v488 = vpop.f32.mrf.mxu0
    %v489 = vadd.f32 0.0, %v488
    %490 = vdwg.mxu0
    %v491 = vadd.f32 %v278, %v480
    %v492 = vadd.f32 %v281, %v483
    %v493 = vadd.f32 %v284, %v486
    %v494 = vadd.f32 %v287, %v489
    %v495 = vld [vmem:[%s4] sm:$0xff]
    %v496 = vld [vmem:[%s4 + $0x8] sm:$0xff]
    %v497 = vld [vmem:[%s4 + $0x10] sm:$0xff]
    %v498 = vld [vmem:[%s4 + $0x18] sm:$0xff]
    %500 = vset.pattern.permute.xlu0 0
    %501 = vperm.xlu0 %500, %v495
    %v502 = vpop.permute.xlu0 %501
    %505 = vset.pattern.permute.xlu0 0
    %506 = vperm.xlu0 %505, %v496
    %v507 = vpop.permute.xlu0 %506
    %510 = vset.pattern.permute.xlu0 0
    %511 = vperm.xlu0 %510, %v497
    %v512 = vpop.permute.xlu0 %511
    %515 = vset.pattern.permute.xlu0 0
    %516 = vperm.xlu0 %515, %v498
    %v517 = vpop.permute.xlu0 %516
    %v519 = vadd.f32 %v491, %v502
    %v520 = vadd.f32 %v492, %v507
    %v521 = vadd.f32 %v493, %v512
    %v522 = vadd.f32 %v494, %v517
    %v523 = vmax.f32 %v519, 0.0
    %v524 = vmax.f32 %v520, 0.0
    %v525 = vmax.f32 %v521, 0.0
    %v526 = vmax.f32 %v522, 0.0
    %v527 = vld [vmem:[%s5] sm:$0xff]
    %v528 = vld [vmem:[%s5 + $0x8] sm:$0xff]
    %v529 = vld [vmem:[%s5 + $0x10] sm:$0xff]
    %v530 = vld [vmem:[%s5 + $0x18] sm:$0xff]
    %v531 = vld [vmem:[%s6] sm:$0xff]
    %v532 = vld [vmem:[%s6 + $0x8] sm:$0xff]
    %v533 = vld [vmem:[%s6 + $0x10] sm:$0xff]
    %v534 = vld [vmem:[%s6 + $0x18] sm:$0xff]
    %536 = vset.pattern.permute.xlu0 0
    %537 = vperm.xlu0 %536, %v531
    %v538 = vpop.permute.xlu0 %537
    %541 = vset.pattern.permute.xlu0 0
    %542 = vperm.xlu0 %541, %v532
    %v543 = vpop.permute.xlu0 %542
    %546 = vset.pattern.permute.xlu0 0
    %547 = vperm.xlu0 %546, %v533
    %v548 = vpop.permute.xlu0 %547
    %551 = vset.pattern.permute.xlu0 0
    %552 = vperm.xlu0 %551, %v534
    %v553 = vpop.permute.xlu0 %552
    %vm555 = vcmask 261120
    %v557 = vsel %vm555, %v527, 0
    %v560 = vsel %vm555, %v528, 0
    %v563 = vsel %vm555, %v529, 0
    %v566 = vsel %vm555, %v530, 0
    %568 = vmatpush.msra.mxu0 0.0
    %569 = vmatpush.msra.mxu0 0.0
    %570 = vmatpush.msra.mxu0 0.0
    %571 = vmatpush.msra.mxu0 0.0
    %572 = vmatpush.msra.mxu0 0.0
    %573 = vmatpush.msra.mxu0 0.0
    %574 = vmatpush.msra.mxu0 0.0
    %575 = vmatpush.msra.mxu0 0.0
    %576 = vmatpush.msra.mxu0 0.0
    %577 = vmatpush.msra.mxu0 0.0
    %578 = vmatpush.msra.mxu0 0.0
    %579 = vmatpush.msra.mxu0 0.0
    %580 = vmatpush.msra.mxu0 %v526
    %581 = vmatpush.msra.mxu0 %v525
    %582 = vmatpush.msra.mxu0 %v524
    %583 = vmatpush.msra.mxu0 %v523
    %584 = vmatmul.f32.gmra.mxu0 %v557
    %v585 = vpop.f32.mrf.mxu0
    %v586 = vadd.f32 %v538, %v585
    %587 = vmatmul.f32.gmra.mxu0 %v560
    %v588 = vpop.f32.mrf.mxu0
    %v589 = vadd.f32 %v543, %v588
    %590 = vmatmul.f32.gmra.mxu0 %v563
    %v591 = vpop.f32.mrf.mxu0
    %v592 = vadd.f32 %v548, %v591
    %593 = vmatmul.f32.gmra.mxu0 %v566
    %v594 = vpop.f32.mrf.mxu0
    %v595 = vadd.f32 %v553, %v594
    %596 = vdwg.mxu0
    %v597 = vmax.f32 %v586, 0.0
    %v598 = vmax.f32 %v589, 0.0
    %v599 = vmax.f32 %v592, 0.0
    %v600 = vmax.f32 %v595, 0.0
    %v601 = vld [vmem:[%s7] sm:$0x1]
    %v602 = vld [vmem:[#allocation2] sm:$0x1]
    %604 = vset.pattern.permute.xlu0 0
    %605 = vperm.xlu0 %604, %v602
    %v606 = vpop.permute.xlu0 %605
    %v608 = vperm.slane %v606, 0
    %v610 = vsel %vm555, %v601, 0
    %612 = vmatpush.msra.mxu0 0.0
    %613 = vmatpush.msra.mxu0 0.0
    %614 = vmatpush.msra.mxu0 0.0
    %615 = vmatpush.msra.mxu0 0.0
    %616 = vmatpush.msra.mxu0 0.0
    %617 = vmatpush.msra.mxu0 0.0
    %618 = vmatpush.msra.mxu0 0.0
    %619 = vmatpush.msra.mxu0 0.0
    %620 = vmatpush.msra.mxu0 0.0
    %621 = vmatpush.msra.mxu0 0.0
    %622 = vmatpush.msra.mxu0 0.0
    %623 = vmatpush.msra.mxu0 0.0
    %624 = vmatpush.msra.mxu0 %v600
    %625 = vmatpush.msra.mxu0 %v599
    %626 = vmatpush.msra.mxu0 %v598
    %627 = vmatpush.msra.mxu0 %v597
    %628 = vmatmul.f32.gmra.mxu0 %v610
    %v629 = vpop.f32.mrf.mxu0
    %v630 = vadd.f32 %v608, %v629
    %631 = vdwg.mxu0
    %632 = vst [vmem:[#allocation3] sm:$0x1] %v630
    // Predicated region
    $region38: #{tpu_custom_call.1} parent=1 // pred_check
      _
    $region39: #{tpu_custom_call.1} parent=1 // pred_check_branch
      %634 = sbr.rel (0) target = $region41
    $region40: #{tpu_custom_call.1} parent=1 // pred_region
      %636 = vsyncadd [#allocation4], 0
      %s638 = sshll.u32 [#allocation3], 4
      %s639 = int_to_ptr.vmem [resolvable:$true] %s638
      %s640 = sshll.u32 %s9, 4
      %s641 = int_to_ptr.hbm [resolvable:$true] %s640
      %643 = dma.vmem_to_hbm [thread:$0]  %s639, 16, %s641, [#allocation4]
    $region41: #{tpu_custom_call.1} parent=1 // pred_fallthru
      _
    // Predicated region
    $region42: #{tpu_custom_call.1} parent=1 // pred_check
      _
    $region43: #{tpu_custom_call.1} parent=1 // pred_check_branch
      %645 = sbr.rel (0) target = $region45
    $region44: #{tpu_custom_call.1} parent=1 // pred_region
      %647 = dma.done [#allocation4], 16
    $region45: #{tpu_custom_call.1} parent=1 // pred_fallthru
      _
    %648 = vsyncpa [#allocation4], 1

</llo_original>
